<compile_context>
chip_gen: v6e
topology: v6e:2x2x1
jax: 0.10.0
libtpu: 0.0.40
codegen_flags: <defaults>
</compile_context>

<pallas_src>
import functools

import numpy as np
import jax
import jax.numpy as jnp
from jax.experimental import pallas as pl
from jax.experimental.pallas import tpu as pltpu


# ------------------- host-side (trace-time) spatial operators ----------------

def _bilinear_matrix_np(in_size, scale):
    """Row matrix of F.interpolate(mode='bilinear', align_corners=False)."""
    out_size = in_size * scale
    inv = in_size / out_size
    M = np.zeros((out_size, in_size), np.float32)
    for o in range(out_size):
        src = (o + 0.5) * inv - 0.5
        if src < 0.0:
            src = 0.0
        x0 = min(int(np.floor(src)), in_size - 1)
        x1 = min(x0 + 1, in_size - 1)
        frac = src - x0
        M[o, x0] += 1.0 - frac
        M[o, x1] += frac
    return M


def _nearest_matrix_np(in_size, scale):
    """Row matrix of nn.Upsample(scale_factor=scale) (default mode='nearest')."""
    out_size = in_size * scale
    M = np.zeros((out_size, in_size), np.float32)
    for o in range(out_size):
        M[o, o // scale] = 1.0
    return M


def _pick_cols_tile(total, max_cols=2048):
    """Largest multiple-of-128 divisor of `total` <= max_cols, else full extent."""
    if total <= max_cols:
        return total
    t = max_cols - max_cols % 128
    while t >= 128:
        if total % t == 0:
            return t
        t -= 128
    return total


# --------------------------- kernel 1: stage projection ----------------------

def _stage_proj_kernel(x_ref, w_ref, o_ref):
    # x: (1, C, t_hw) f32 slab of the NCHW feature, w: (K, C) bf16 folded weights.
    # bf16 MXU matmul, f32 accumulation; Z is stored bf16 (small, and it is a
    # bf16 MXU operand of the upsample kernel anyway).
    x = x_ref[0].astype(jnp.bfloat16)
    o_ref[0] = jnp.dot(
        w_ref[...], x, preferred_element_type=jnp.float32
    ).astype(jnp.bfloat16)


def stage_projection(x, w_t):
    """x: (N, C, HW) float32 (NCHW, spatial flattened), w_t: (K, C) bf16 -> (N, K, HW) bf16."""
    N, C, HW = x.shape
    K = w_t.shape[0]
    t_hw = _pick_cols_tile(HW)
    grid = (N, HW // t_hw)
    cost = pl.CostEstimate(
        flops=2 * N * K * C * HW,
        transcendentals=0,
        bytes_accessed=int(x.size) * 4 + int(w_t.size) * 2 + N * K * HW * 2,
    )
    return pl.pallas_call(
        _stage_proj_kernel,
        out_shape=jax.ShapeDtypeStruct((N, K, HW), jnp.bfloat16),
        grid_spec=pltpu.PrefetchScalarGridSpec(
            num_scalar_prefetch=0,
            grid=grid,
            in_specs=[
                pl.BlockSpec((1, C, t_hw), lambda n, j: (n, 0, j)),
                pl.BlockSpec((K, C), lambda n, j: (0, 0)),   # weights stay resident
            ],
            out_specs=pl.BlockSpec((1, K, t_hw), lambda n, j: (n, 0, j)),
        ),
        compiler_params=pltpu.CompilerParams(
            dimension_semantics=("parallel", "parallel"),
            vmem_limit_bytes=32 * 1024 * 1024,
        ),
        cost_estimate=cost,
    )(x, w_t)


# ------------------- kernel 2: fused upsample + stage accumulation -----------

def _upsample_accum_kernel(*refs, n_stages, tk):
    z_refs = refs[:n_stages]                       # (1, tk, H_s, W_s) bf16 each
    l_refs = refs[n_stages:2 * n_stages]           # (4H0, H_s) bf16 each
    r_refs = refs[2 * n_stages:3 * n_stages]       # (W_s, 4W0) bf16 each
    b_ref = refs[3 * n_stages]                     # (tk, 1) f32
    o_ref = refs[3 * n_stages + 1]                 # (1, tk, 4H0, 4W0) f32

    for k in range(tk):                            # unrolled: tk is small (8 here)
        acc = None
        for s in range(n_stages):
            z = z_refs[s][0, k]                                              # (H_s, W_s)
            t = jnp.dot(z, r_refs[s][...],
                        preferred_element_type=jnp.float32)                  # (H_s, 4W0)
            p = jnp.dot(l_refs[s][...], t.astype(jnp.bfloat16),
                        preferred_element_type=jnp.float32)                  # (4H0, 4W0)
            acc = p if acc is None else acc + p
        # lane-dense (4W0-wide) f32 store; per-class bias broadcast from a (1,1) slice
        o_ref[0, k] = acc + b_ref[k:k + 1, :]


def upsample_accumulate(zs, Ls, Rs, b_eff):
    n_stages = len(zs)
    N, K = zs[0].shape[0], zs[0].shape[1]
    H4, W4 = Ls[0].shape[0], Rs[0].shape[1]
    # TODO(synk): for real configs where num_classes is not a multiple of 8, pad K
    # up to a multiple of 8 (and slice after the call) so the class block stays small.
    tk = 8 if K % 8 == 0 else K
    grid = (N, K // tk)

    in_specs = []
    for z in zs:
        H, W = z.shape[2], z.shape[3]
        in_specs.append(pl.BlockSpec((1, tk, H, W), lambda n, kb: (n, kb, 0, 0)))
    for L in Ls:
        in_specs.append(pl.BlockSpec(L.shape, lambda n, kb: (0, 0)))
    for R in Rs:
        in_specs.append(pl.BlockSpec(R.shape, lambda n, kb: (0, 0)))
    in_specs.append(pl.BlockSpec((tk, 1), lambda n, kb: (kb, 0)))

    flops = 0
    bytes_accessed = N * K * H4 * W4 * 4 + int(b_eff.size) * 4
    for z, L, R in zip(zs, Ls, Rs):
        H, W = z.shape[2], z.shape[3]
        flops += 2 * N * K * W4 * (H * W + H4 * H)
        bytes_accessed += int(z.size) * 2 + int(L.size) * 2 + int(R.size) * 2

    kernel = functools.partial(_upsample_accum_kernel, n_stages=n_stages, tk=tk)
    return pl.pallas_call(
        kernel,
        out_shape=jax.ShapeDtypeStruct((N, K, H4, W4), jnp.float32),
        grid_spec=pltpu.PrefetchScalarGridSpec(
            num_scalar_prefetch=0,
            grid=grid,
            in_specs=in_specs,
            out_specs=pl.BlockSpec((1, tk, H4, W4), lambda n, kb: (n, kb, 0, 0)),
        ),
        compiler_params=pltpu.CompilerParams(
            dimension_semantics=("parallel", "parallel"),
            vmem_limit_bytes=32 * 1024 * 1024,
        ),
        cost_estimate=pl.CostEstimate(
            flops=flops, transcendentals=0, bytes_accessed=int(bytes_accessed)),
    )(*zs, *Ls, *Rs, b_eff)


# ------------------------------ params & folding ------------------------------

def init_params(key, dims, decoder_dim, num_classes):
    """Deterministic synthetic weights, channels-last: (Cin, Cout) = PyTorch W.reshape(Co,Ci).T."""
    params = {}
    n = len(dims)
    keys = jax.random.split(key, 2 * n + 4)
    for i, d in enumerate(dims):
        params[f"fuse_w{i}"] = 0.05 * jax.random.normal(keys[2 * i], (d, decoder_dim), jnp.float32)
        params[f"fuse_b{i}"] = 0.05 * jax.random.normal(keys[2 * i + 1], (decoder_dim,), jnp.float32)
    params["seg_w1"] = 0.05 * jax.random.normal(keys[2 * n], (4 * decoder_dim, decoder_dim), jnp.float32)
    params["seg_b1"] = 0.05 * jax.random.normal(keys[2 * n + 1], (decoder_dim,), jnp.float32)
    params["seg_w2"] = 0.05 * jax.random.normal(keys[2 * n + 2], (decoder_dim, num_classes), jnp.float32)
    params["seg_b2"] = 0.05 * jax.random.normal(keys[2 * n + 3], (num_classes,), jnp.float32)
    return params


def fold_params(params, dims, decoder_dim, num_classes):
    """One-time algebraic fold (valid because there is no nonlinearity):
       W_eff_i = fuse_w_i @ seg_w1[i*D:(i+1)*D] @ seg_w2         (C_i, K)
       b_eff   = (sum_i fuse_b_i @ seg_w1_i + seg_b1) @ seg_w2 + seg_b2."""
    D, K = decoder_dim, num_classes
    folded = {}
    b_acc = params["seg_b1"]
    for i in range(len(dims)):
        w1_i = params["seg_w1"][i * D:(i + 1) * D, :]                   # (D, D)
        w_eff = params[f"fuse_w{i}"] @ w1_i @ params["seg_w2"]          # (C_i, K)
        folded[f"wT{i}"] = w_eff.T.astype(jnp.bfloat16)                 # (K, C_i) MXU operand
        b_acc = b_acc + params[f"fuse_b{i}"] @ w1_i
    b_eff = b_acc @ params["seg_w2"] + params["seg_b2"]                 # (K,)
    folded["b_eff"] = b_eff.reshape(K, 1).astype(jnp.float32)
    return folded


# --------------------------------- forward ------------------------------------

def segformer_head_forward(features, folded, dims, decoder_dim, num_classes):
    """Inference forward: returns (predictions NCHW float32, {})."""
    n_stages = len(dims)
    feats = [features[f"mit_stage_{i + 1}"] for i in range(n_stages)]
    N, _, H0, W0 = feats[0].shape

    # Stage channel projections Z_i (low resolution, num_classes channels).
    zs = []
    for i, f in enumerate(feats):
        _, C, H, W = f.shape
        z = stage_projection(f.reshape(N, C, H * W), folded[f"wT{i}"])
        zs.append(z.reshape(N, num_classes, H, W))       # minor-dim reshape: free

    # Folded spatial operators: nearest x2**i followed by bilinear x4.
    # (Entries are multiples of 1/8 -> exact in bf16.)
    bil_h = _bilinear_matrix_np(H0, 4)
    bil_w = _bilinear_matrix_np(W0, 4)
    Ls, Rs = [], []
    for i, f in enumerate(feats):
        H, W = f.shape[2], f.shape[3]
        s = 2 ** i
        Ls.append(jnp.asarray(bil_h @ _nearest_matrix_np(H, s), dtype=jnp.bfloat16))      # (4H0, H)
        Rs.append(jnp.asarray((bil_w @ _nearest_matrix_np(W, s)).T, dtype=jnp.bfloat16))  # (W, 4W0)

    predictions = upsample_accumulate(zs, Ls, Rs, folded["b_eff"])
    # TODO(synk): training path (cross-entropy loss with ignore_index) not implemented;
    # inference returns (predictions, {}) exactly as the module does.
    return predictions, {}


def reference_forward(features, params, dims, decoder_dim, num_classes):
    """Pure-JAX float32 reference of the *unfused* module (mirrors the PyTorch graph)."""
    fused = []
    for i in range(len(dims)):
        f = features[f"mit_stage_{i + 1}"]
        N, C, H, W = f.shape
        x = jnp.transpose(f, (0, 2, 3, 1)).reshape(-1, C)
        y = (x @ params[f"fuse_w{i}"] + params[f"fuse_b{i}"]).reshape(N, H, W, decoder_dim)
        s = 2 ** i
        if s > 1:
            y = jnp.repeat(jnp.repeat(y, s, axis=1), s, axis=2)   # nearest upsample
        fused.append(y)
    fused = jnp.concatenate(fused, axis=-1)
    N, H0, W0, _ = fused.shape
    h = fused.reshape(-1, 4 * decoder_dim) @ params["seg_w1"] + params["seg_b1"]
    logits = (h @ params["seg_w2"] + params["seg_b2"]).reshape(N, H0, W0, num_classes)
    logits = jnp.transpose(logits, (0, 3, 1, 2))                  # NCHW
    bh = jnp.asarray(_bilinear_matrix_np(H0, 4))
    bw = jnp.asarray(_bilinear_matrix_np(W0, 4))
    return jnp.einsum("ah,nkhw,bw->nkab", bh, logits, bw)


# ----------------------------------- main --------------------------------------

if __name__ == "__main__":
    key = jax.random.PRNGKey(0)
    dims = (8, 16, 32, 64)
    decoder_dim = 32
    num_classes = 8
    N = 2
    H0 = W0 = 16                       # stage-1 spatial size; stage i is H0 / 2**(i-1)

    kfeat, kparam = jax.random.split(key)
    feat_keys = jax.random.split(kfeat, 4)
    features = {}
    for i in range(4):
        s = 2 ** i
        features[f"mit_stage_{i + 1}"] = jax.random.normal(
            feat_keys[i], (N, dims[i], H0 // s, W0 // s), jnp.float32
        )

    params = init_params(kparam, dims, decoder_dim, num_classes)
    folded = fold_params(params, dims, decoder_dim, num_classes)   # one-time preprocessing

    predictions, aux = segformer_head_forward(features, folded, dims, decoder_dim, num_classes)
    jax.block_until_ready(predictions)

    assert predictions.shape == (N, num_classes, 4 * H0, 4 * W0), predictions.shape
    assert predictions.dtype == jnp.float32
    assert aux == {}

    # Validate the Pallas (fused, bf16-MXU) path against the unfused f32 reference.
    ref = reference_forward(features, params, dims, decoder_dim, num_classes)
    np.testing.assert_allclose(
        np.asarray(predictions, dtype=np.float32),
        np.asarray(ref, dtype=np.float32),
        rtol=5e-2, atol=5e-3,
    )
    print("KERNEL_OK")
</pallas_src>

<mosaic_0001>
module attributes {stable_mosaic.version = 11 : i64} {
  func.func @_stage_proj_kernel(%arg0: i32, %arg1: i32, %arg2: memref<1x8x256xf32, #tpu.memory_space<vmem>>, %arg3: memref<8x8xbf16, #tpu.memory_space<vmem>>, %arg4: memref<1x8x256xbf16, #tpu.memory_space<vmem>>) attributes {dimension_semantics = [#tpu.dimension_semantics<parallel>, #tpu.dimension_semantics<parallel>], iteration_bounds = array<i64: 2, 1>, scalar_prefetch = 0 : i64, scratch_operands = 0 : i64, tpu.core_type = #tpu.core_type<tc>, window_params = [{transform_indices = @transform_0, window_bounds = array<i64: 1, 8, 256>}, {pipeline_mode = #tpu.pipeline_mode<synchronous>, transform_indices = @transform_1, window_bounds = array<i64: 8, 8>}, {transform_indices = @transform_2, window_bounds = array<i64: 1, 8, 256>}]} {
    %c0 = arith.constant 0 : index
    %c0_0 = arith.constant 0 : index
    %c0_1 = arith.constant 0 : index
    %0 = vector.load %arg2[%c0, %c0_0, %c0_1] : memref<1x8x256xf32, #tpu.memory_space<vmem>>, vector<1x8x256xf32>
    %1 = vector.shape_cast %0 : vector<1x8x256xf32> to vector<8x256xf32>
    %2 = arith.truncf %1 : vector<8x256xf32> to vector<8x256xbf16>
    %c0_2 = arith.constant 0 : index
    %c0_3 = arith.constant 0 : index
    %3 = vector.load %arg3[%c0_2, %c0_3] : memref<8x8xbf16, #tpu.memory_space<vmem>>, vector<8x8xbf16>
    %cst = arith.constant dense<0.000000e+00> : vector<8x256xf32>
    %4 = tpu.matmul %3, %2, %cst {dimension_numbers = #tpu.dot_dimension_numbers<[1], [0], [0], [1], [0, 0, 1, 1], [], []>} : vector<8x8xbf16>, vector<8x256xbf16>, vector<8x256xf32> -> vector<8x256xf32>
    %5 = arith.truncf %4 : vector<8x256xf32> to vector<8x256xbf16>
    %c0_4 = arith.constant 0 : index
    %c0_5 = arith.constant 0 : index
    %c0_6 = arith.constant 0 : index
    %6 = vector.load %arg4[%c0_4, %c0_5, %c0_6] : memref<1x8x256xbf16, #tpu.memory_space<vmem>>, vector<1x8x256xbf16>
    %7 = vector.shape_cast %6 : vector<1x8x256xbf16> to vector<8x256xbf16>
    %8 = vector.shape_cast %5 : vector<8x256xbf16> to vector<1x8x256xbf16>
    tpu.vector_store %arg4[%c0_4, %c0_5, %c0_6], %8 {strides = array<i32>} : memref<1x8x256xbf16, #tpu.memory_space<vmem>>, vector<1x8x256xbf16>,
    return
  }
  func.func @transform_0(%arg0: i32, %arg1: i32) -> (i32, i32, i32) {
    %c0_i32 = arith.constant 0 : i32
    %c0_i32_0 = arith.constant 0 : i32
    return %arg0, %c0_i32, %arg1 : i32, i32, i32
  }
  func.func @transform_1(%arg0: i32, %arg1: i32) -> (i32, i32) {
    %c0_i32 = arith.constant 0 : i32
    %c0_i32_0 = arith.constant 0 : i32
    %c0_i32_1 = arith.constant 0 : i32
    return %c0_i32, %c0_i32_0 : i32, i32
  }
  func.func @transform_2(%arg0: i32, %arg1: i32) -> (i32, i32, i32) {
    %c0_i32 = arith.constant 0 : i32
    %c0_i32_0 = arith.constant 0 : i32
    return %arg0, %c0_i32, %arg1 : i32, i32, i32
  }
}

</mosaic_0001>

<llo_original>
// kernel: tpu_custom_call.1
$region0: #{tpu_custom_call.1}
  #allocation0 [shape = 'u32[]', space=smem, size = 0x4, offset = 0x4, fixed_abs, tag = 'smem constant byte address 0x4 - core index']
  #allocation1 [shape = 'u32[144,128]{1,0:T(1,128)}', space=vmem, size = 0x12000, scoped, tag = 'internal scratch']
  %s0 = inlined_call_operand.hbm [shape: f32[2,8,256], index: 0, kind: input, shape index: {}]
  %s1 = inlined_call_operand.hbm [shape: bf16[8,8], index: 1, kind: input, shape index: {}]
  %s2 = inlined_call_operand.hbm [shape: bf16[2,8,256], index: 2, kind: output, shape index: {}]
  %s3 = sld [smem:[#allocation0]]
  $region49: #{tpu_custom_call.1} parent=0
    _
  %s5 = ssub.s32 1, %s3
  %s6 = scalar_select 0, %s5, %s3
  $region1: #{tpu_custom_call.1} parent=0
    #allocation2 [shape = 'u8[16384]{0}', space=vmem, size = 0x4000, scoped, tag = 'input window, operand 0']
    #allocation3 [shape = 's32[2]{0}', space=sflag, size = 0x8, scoped, tag = 'scoped memory for tpu_custom_call.1']
    #allocation4 [shape = 's32[2]{0}', space=sflag, size = 0x8, scoped, tag = 'scoped memory for tpu_custom_call.1']
    #allocation5 [shape = 'u8[2048]{0}', space=vmem, size = 0x800, scoped, tag = 'input window, operand 1, single buffered']
    #allocation6 [shape = 's32[1]{0}', space=sflag, size = 0x4, scoped, tag = 'scoped memory for tpu_custom_call.1']
    #allocation7 [shape = 'u8[8192]{0}', space=vmem, size = 0x2000, scoped, tag = 'output window, operand 0']
    %7 = vsyncpa [#allocation3], 0
    %s8 = scalar_lea.sflag [#allocation3], 1
    %9 = vsyncpa %s8, 0
    %10 = vsyncpa [#allocation6], 0
    %11 = vsyncpa [#allocation4], 0
    %s12 = scalar_lea.sflag [#allocation4], 1
    %13 = vsyncpa %s12, 0
    loop: start=0, step=1, limit=4
    $region2: #{tpu_custom_call.1} parent=1 // loop_pre_header
      _
    $region3: #{tpu_custom_call.1} parent=1 // loop_header
      %s15 = sphi 0, %s19
      %p16 = scmp.ge.s32.totalorder %s15, 4
      %s22 = sphi 0, %s34
      %s23 = sphi 0, %s30
      %s24 = sphi 0, %s22
      %s25 = sphi 0, %s23
      %s26 = sphi 0, %s24
      %s27 = sphi 0, %s25
      %s39 = sphi 0, %s41
      %s42 = sphi 0, %s39
      %s43 = sphi 0, %s42
      %s59 = sphi 0, %s43
      %s63 = sphi 0, %s63
      %s65 = sphi 0, %s63
      %s66 = sphi 0, %s65
      %s80 = sphi 0, %s66
      %s88 = sphi 0, %s90
      %s91 = sphi 0, %s88
      %s92 = sphi 0, %s91
      %s108 = sphi 0, %s92
    $region4: #{tpu_custom_call.1} parent=1 // loop_header_branch
      %18 = sbr.rel (%p16) target = $region8
    $region5: #{tpu_custom_call.1} parent=1 // loop_body
      %s20 = ssub.s32 %s15, 1
      %s21 = ssub.s32 %s15, 2
      %s28 = sadd.s32 1, %s23
      %p29 = scmp.ge.s32.totalorder %s28, 1
      %s30 = scalar_select %p29, 0, %s28
      %s31 = sadd.s32 1, %s22
      %s32 = scalar_select %p29, %s31, %s22
      %p33 = scmp.ge.s32.totalorder %s32, 2
      %s34 = scalar_select %p33, 0, %s32
      %s35 = ssub.s32 %s22, %s34
      %s36 = ssub.s32 %s23, %s30
      %s37 = sor.u32 %s35, %s36
      %p38 = scmp.eq.s32.totalorder %s37, 0
      %s40 = sadd.s32 %s39, 1
      %s41 = scalar_select %p38, %s39, %s40
      %p44 = pneg %p38
      %p45 = scmp.eq.s32.totalorder %s15, 1
      %p46 = por %p44, %p45
      %p47 = scmp.ne.s32.totalorder %s39, %s42
      %p48 = scmp.eq.s32.totalorder %s15, 0
      %p49 = por %p47, %p48
      %p50 = scmp.ne.s32.totalorder %s39, %s42
      %p51 = scmp.eq.s32.totalorder %s20, 1
      %p52 = por %p50, %p51
      %p53 = scmp.ne.s32.totalorder %s42, %s43
      %p54 = scmp.eq.s32.totalorder %s20, 0
      %p55 = por %p53, %p54
      %p56 = scmp.ne.s32.totalorder %s42, %s43
      %p57 = scmp.eq.s32.totalorder %s21, 1
      %p58 = por %p56, %p57
      %p60 = scmp.ne.s32.totalorder %s43, %s59
      %p61 = scmp.eq.s32.totalorder %s21, 0
      %p62 = por %p60, %p61
      %s64 = sadd.s32 %s63, 1
      %p67 = scmp.eq.s32.totalorder %s15, 1
      %p68 = scmp.ne.s32.totalorder %s63, %s65
      %p69 = scmp.eq.s32.totalorder %s15, 0
      %p70 = por %p68, %p69
      %p71 = scmp.ne.s32.totalorder %s63, %s65
      %p72 = scmp.eq.s32.totalorder %s20, 1
      %p73 = por %p71, %p72
      %p74 = scmp.ne.s32.totalorder %s65, %s66
      %p75 = scmp.eq.s32.totalorder %s20, 0
      %p76 = por %p74, %p75
      %p77 = scmp.ne.s32.totalorder %s65, %s66
      %p78 = scmp.eq.s32.totalorder %s21, 1
      %p79 = por %p77, %p78
      %p81 = scmp.ne.s32.totalorder %s66, %s80
      %p82 = scmp.eq.s32.totalorder %s21, 0
      %p83 = por %p81, %p82
      %s84 = ssub.s32 %s22, %s34
      %s85 = ssub.s32 %s23, %s30
      %s86 = sor.u32 %s84, %s85
      %p87 = scmp.eq.s32.totalorder %s86, 0
      %s89 = sadd.s32 %s88, 1
      %s90 = scalar_select %p87, %s88, %s89
      %p93 = pneg %p87
      %p94 = scmp.eq.s32.totalorder %s15, 1
      %p95 = por %p93, %p94
      %p96 = scmp.ne.s32.totalorder %s88, %s91
      %p97 = scmp.eq.s32.totalorder %s15, 0
      %p98 = por %p96, %p97
      %p99 = scmp.ne.s32.totalorder %s88, %s91
      %p100 = scmp.eq.s32.totalorder %s20, 1
      %p101 = por %p99, %p100
      %p102 = scmp.ne.s32.totalorder %s91, %s92
      %p103 = scmp.eq.s32.totalorder %s20, 0
      %p104 = por %p102, %p103
      %p105 = scmp.ne.s32.totalorder %s91, %s92
      %p106 = scmp.eq.s32.totalorder %s21, 1
      %p107 = por %p105, %p106
      %p109 = scmp.ne.s32.totalorder %s92, %s108
      %p110 = scmp.eq.s32.totalorder %s21, 0
      %p111 = por %p109, %p110
      %p112 = scmp.le.s32.totalorder 1, %s15
      %p113 = scmp.lt.s32.totalorder %s15, 3
      %p114 = pnand %p112, %p113
      %p115 = pneg %p114
      // Predicated region
      $region9: #{tpu_custom_call.1} parent=5 // pred_check
        _
      $region10: #{tpu_custom_call.1} parent=5 // pred_check_branch
        %117 = sbr.rel (%p114) target = $region12
      $region11: #{tpu_custom_call.1} parent=5 // pred_region
        %s118 = ssub.s32 %s15, 1
        // Predicated region
        $region13: #{tpu_custom_call.1} parent=11 // pred_check
          %p119 = pneg %p76
        $region14: #{tpu_custom_call.1} parent=11 // pred_check_branch
          %121 = sbr.rel (%p119) target = $region16
        $region15: #{tpu_custom_call.1} parent=11 // pred_region
          %s123 = ssub.s32 64, 64
          %124 = vsyncadd [#allocation6], %s123
          %s126 = sshll.u32 [#allocation5], 4
          %s127 = int_to_ptr.vmem [resolvable:$true] %s126
          %129 = dma.hbm_to_vmem [thread:$0]  %s1, 64, %s127, [#allocation6]
        $region16: #{tpu_custom_call.1} parent=11 // pred_fallthru
          _
      $region12: #{tpu_custom_call.1} parent=5 // pred_fallthru
        _
      %p130 = scmp.lt.s32.totalorder %s15, 2
      // Predicated region
      $region17: #{tpu_custom_call.1} parent=5 // pred_check
        %p131 = pneg %p130
      $region18: #{tpu_custom_call.1} parent=5 // pred_check_branch
        %133 = sbr.rel (%p131) target = $region20
      $region19: #{tpu_custom_call.1} parent=5 // pred_region
        // Predicated region
        $region21: #{tpu_custom_call.1} parent=19 // pred_check
          %p134 = pneg %p49
        $region22: #{tpu_custom_call.1} parent=19 // pred_check_branch
          %136 = sbr.rel (%p134) target = $region24
        $region23: #{tpu_custom_call.1} parent=19 // pred_region
          %s137 = sand.u32 %s39, 1
          %s138 = scalar_lea.sflag [#allocation3], %s137
          %s139 = sand.u32 %s39, 1
          %s140 = smul.addr %s139, 16
          %s141 = scalar_lea.vmem [#allocation2], %s140
          %s142 = smul.u32 2, %s23
          %s144 = ssub.s32 256, 256
          %145 = vsyncadd %s138, %s144
          %s146 = smul.addr %s22, 2
          %s147 = sadd.s32 %s142, %s146
          %s148 = smul.addr %s147, 128
          %s149 = scalar_lea.hbm %s0, %s148
          %s151 = sshll.u32 %s141, 4
          %s152 = int_to_ptr.vmem [resolvable:$true] %s151
          %154 = dma.hbm_to_vmem [thread:$0]  %s149, 256, %s152, %s138
        $region24: #{tpu_custom_call.1} parent=19 // pred_fallthru
          _
      $region20: #{tpu_custom_call.1} parent=5 // pred_fallthru
        _
      %p155 = scmp.le.s32.totalorder 1, %s15
      %p156 = scmp.lt.s32.totalorder %s15, 3
      %p157 = pnand %p155, %p156
      %p158 = pneg %p157
      // Predicated region
      $region25: #{tpu_custom_call.1} parent=5 // pred_check
        _
      $region26: #{tpu_custom_call.1} parent=5 // pred_check_branch
        %160 = sbr.rel (%p157) target = $region28
      $region27: #{tpu_custom_call.1} parent=5 // pred_region
        %s161 = ssub.s32 %s15, 1
        %s162 = sand.u32 %s42, 1
        %s163 = scalar_lea.sflag [#allocation3], %s162
        %s164 = sand.u32 %s42, 1
        %s165 = smul.addr %s164, 16
        %s166 = scalar_lea.vmem [#allocation2], %s165
        // Predicated region
        $region29: #{tpu_custom_call.1} parent=27 // pred_check
          %p167 = pneg %p55
        $region30: #{tpu_custom_call.1} parent=27 // pred_check_branch
          %169 = sbr.rel (%p167) target = $region32
        $region31: #{tpu_custom_call.1} parent=27 // pred_region
          %170 = dma.done %s163, 256
        $region32: #{tpu_custom_call.1} parent=27 // pred_fallthru
          _
        // Predicated region
        $region33: #{tpu_custom_call.1} parent=27 // pred_check
          %p171 = pneg %p76
        $region34: #{tpu_custom_call.1} parent=27 // pred_check_branch
          %173 = sbr.rel (%p171) target = $region36
        $region35: #{tpu_custom_call.1} parent=27 // pred_region
          %174 = dma.done [#allocation6], 64
        $region36: #{tpu_custom_call.1} parent=27 // pred_fallthru
          _
        %s175 = sand.u32 %s42, 1
        %s176 = scalar_lea.sflag [#allocation3], %s175
        %s177 = sand.u32 %s42, 1
        %s178 = smul.addr %s177, 16
        %s179 = scalar_lea.vmem [#allocation2], %s178
        %p180 = pneg %p55
        %p181 = pneg %p52
        %p182 = pneg %p76
        %p183 = pneg %p73
        %p184 = pneg %p104
        %p185 = pneg %p101
        %s186 = sand.u32 %s91, 1
        %s187 = scalar_lea.sflag [#allocation4], %s186
        %s188 = sand.u32 %s91, 1
        %s189 = smul.addr %s188, 8
        %s190 = scalar_lea.vmem [#allocation7], %s189
        %s191 = smul.u32 2, %s25
        %s192 = smul.u32 2, %s25
        %v194 = vld [vmem:[%s166] sm:$0xff]
        %v195 = vld [vmem:[%s166 + $0x8] sm:$0xff]
        %v196 = vpack.c.bf16 %v194, %v194
        %v197 = vpack.c.bf16 %v195, %v195
        %v198 = vld [vmem:[#allocation5] sm:$0xf]
        %vm199 = vcmask 64512
        %v201 = vsel %vm199, %v198, 0
        %vm203 = vcmask 1043456
        %v205 = vsel %vm203, %v196, 0
        %v208 = vsel %vm203, %v197, 0
        %210 = vmatprep.subr.bf16.mxu0 0
        %211 = vmatpush1.bf16.msra.mxu0 0
        %212 = vmatprep.subr.bf16.mxu0 0
        %213 = vmatpush1.bf16.msra.mxu0 0
        %214 = vmatprep.subr.bf16.mxu0 0
        %215 = vmatpush1.bf16.msra.mxu0 0
        %216 = vmatprep.subr.bf16.mxu0 0
        %217 = vmatpush1.bf16.msra.mxu0 0
        %218 = vmatprep.subr.bf16.mxu0 0
        %219 = vmatpush1.bf16.msra.mxu0 0
        %220 = vmatprep.subr.bf16.mxu0 0
        %221 = vmatpush1.bf16.msra.mxu0 0
        %222 = vmatprep.subr.bf16.mxu0 0
        %223 = vmatpush1.bf16.msra.mxu0 0
        %224 = vmatprep.subr.bf16.mxu0 %v208
        %225 = vmatpush1.bf16.msra.mxu0 %v205
        %226 = vmatprep.subr.bf16.mxu0 0
        %227 = vmatpush2.bf16.msra.mxu0 0
        %228 = vmatprep.subr.bf16.mxu0 0
        %229 = vmatpush2.bf16.msra.mxu0 0
        %230 = vmatprep.subr.bf16.mxu0 0
        %231 = vmatpush2.bf16.msra.mxu0 0
        %232 = vmatprep.subr.bf16.mxu0 0
        %233 = vmatpush2.bf16.msra.mxu0 0
        %234 = vmatprep.subr.bf16.mxu0 0
        %235 = vmatpush2.bf16.msra.mxu0 0
        %236 = vmatprep.subr.bf16.mxu0 0
        %237 = vmatpush2.bf16.msra.mxu0 0
        %238 = vmatprep.subr.bf16.mxu0 0
        %239 = vmatpush2.bf16.msra.mxu0 0
        %240 = vmatprep.subr.bf16.mxu0 0
        %241 = vmatpush2.bf16.msra.mxu0 0
        %242 = vmatprep.mubr.bf16.mxu0 0
        %243 = vmatmul.mubr.bf16.gmra.mxu0 %v201
        %v244 = vpop.f32.mrf.mxu0
        %v245 = vadd.f32 0.0, %v244
        %v246 = vpop.f32.mrf.mxu0
        %v247 = vadd.f32 0.0, %v246
        %v248 = vpop.f32.mrf.mxu0
        %v249 = vpop.f32.mrf.mxu0
        %250 = vdwg.mxu0
        %v251 = vpack.c.bf16 %v245, %v245
        %v252 = vpack.c.bf16 %v247, %v247
        %v255 = vunpack.c.l.b16 %v251
        %v256 = vunpack.c.l.b16 %v252
        %v257 = vpack.c.b16 %v256, %v255
        %259 = vst [vmem:[%s190] sm:$0xff] %v257
        %s260 = sand.u32 %s91, 1
        %s261 = scalar_lea.sflag [#allocation4], %s260
        %s262 = sand.u32 %s91, 1
        %s263 = smul.addr %s262, 8
        %s264 = scalar_lea.vmem [#allocation7], %s263
        // Predicated region
        $region37: #{tpu_custom_call.1} parent=27 // pred_check
          %p265 = pneg %p101
        $region38: #{tpu_custom_call.1} parent=27 // pred_check_branch
          %267 = sbr.rel (%p265) target = $region40
        $region39: #{tpu_custom_call.1} parent=27 // pred_region
          %s268 = smul.u32 2, %s25
          %s270 = ssub.s32 128, 128
          %271 = vsyncadd %s261, %s270
          %s272 = smul.addr %s24, 2
          %s273 = sadd.s32 %s268, %s272
          %s274 = smul.addr %s273, 64
          %s275 = scalar_lea.hbm %s2, %s274
          %s277 = sshll.u32 %s264, 4
          %s278 = int_to_ptr.vmem [resolvable:$true] %s277
          %280 = dma.vmem_to_hbm [thread:$0]  %s278, 128, %s275, %s261
        $region40: #{tpu_custom_call.1} parent=27 // pred_fallthru
          _
      $region28: #{tpu_custom_call.1} parent=5 // pred_fallthru
        _
      %p281 = scmp.le.s32.totalorder 2, %s15
      // Predicated region
      $region41: #{tpu_custom_call.1} parent=5 // pred_check
        %p282 = pneg %p281
      $region42: #{tpu_custom_call.1} parent=5 // pred_check_branch
        %284 = sbr.rel (%p282) target = $region44
      $region43: #{tpu_custom_call.1} parent=5 // pred_region
        %s285 = ssub.s32 %s15, 2
        // Predicated region
        $region45: #{tpu_custom_call.1} parent=43 // pred_check
          %p286 = pneg %p107
        $region46: #{tpu_custom_call.1} parent=43 // pred_check_branch
          %288 = sbr.rel (%p286) target = $region48
        $region47: #{tpu_custom_call.1} parent=43 // pred_region
          %s289 = sand.u32 %s92, 1
          %s290 = scalar_lea.sflag [#allocation4], %s289
          %s291 = sand.u32 %s92, 1
          %s292 = smul.addr %s291, 8
          %s293 = scalar_lea.vmem [#allocation7], %s292
          %294 = dma.done %s290, 128
        $region48: #{tpu_custom_call.1} parent=43 // pred_fallthru
          _
      $region44: #{tpu_custom_call.1} parent=5 // pred_fallthru
        _
    $region6: #{tpu_custom_call.1} parent=1 // loop_footer
      %s19 = sadd.s32 1, %s15
    $region7: #{tpu_custom_call.1} parent=1 // loop_footer_branch
      %14 = sbr.rel target = $region3
    $region8: #{tpu_custom_call.1} parent=1 // loop_exit
      _
    %295 = vsyncpa [#allocation3], 1
    %s296 = scalar_lea.sflag [#allocation3], 1
    %297 = vsyncpa %s296, 1
    %298 = vsyncpa [#allocation6], 1
    %299 = vsyncpa [#allocation4], 1
    %s300 = scalar_lea.sflag [#allocation4], 1
    %301 = vsyncpa %s300, 1

</llo_original>
